<compile_context>
chip_gen: v7x
topology: tpu7x:2x2x1
jax: 0.10.0
libtpu: 0.0.40
codegen_flags: <defaults>
</compile_context>

<pallas_src>
import jax
import jax.numpy as jnp
from jax.experimental import pallas as pl
from jax.experimental.pallas import tpu as pltpu

_EPS = 1e-8  # matches F.cosine_similarity default eps


def _sq_cos_sim_kernel(a_ref, p_ref, n_ref, loss_ref):
    a = a_ref[...].astype(jnp.float32)
    p = p_ref[...].astype(jnp.float32)
    n = n_ref[...].astype(jnp.float32)

    # Per-row reductions over the feature (lane) axis.
    dot_ap = jnp.sum(a * p, axis=-1, keepdims=True)              # (TB, 1)
    dot_an = jnp.sum(a * n, axis=-1, keepdims=True)
    sq_a = jnp.sum(a * a, axis=-1, keepdims=True)
    sq_p = jnp.sum(p * p, axis=-1, keepdims=True)
    sq_n = jnp.sum(n * n, axis=-1, keepdims=True)

    eps2 = jnp.float32(_EPS * _EPS)
    # 1 / max(||a||*||x||, eps) == rsqrt(max(||a||^2 * ||x||^2, eps^2))  (EUP)
    cos_p = dot_ap * jax.lax.rsqrt(jnp.maximum(sq_a * sq_p, eps2))
    cos_n = dot_an * jax.lax.rsqrt(jnp.maximum(sq_a * sq_n, eps2))

    loss_ref[...] = (1.0 - cos_p) * 0.5 + cos_n * cos_n           # (TB, 1)


def _vmem_capacity_bytes():
    try:
        return int(pltpu.get_tpu_info().vmem_capacity_bytes)
    except Exception:
        return 64 << 20  # conservative: v7x per-TensorCore VMEM


def _pick_block_b(B, D, itemsize):
    """Largest batch tile such that 3 inputs x 2 buffers fit a VMEM budget,
    with at least 2 grid blocks when the batch allows it (v7x megacore)."""
    sub = 16 if itemsize < 4 else 8            # sublane packing for bf16/fp8
    capacity = _vmem_capacity_bytes()
    input_budget = (capacity * 55) // 100      # leave headroom for scratch/out

    block_b = min(input_budget // (3 * 2 * D * itemsize), 4096)
    block_b = max(sub, (block_b // sub) * sub)

    if block_b >= B:
        if B >= 2 * sub:
            # Split into (at least) two blocks so both TensorCores get work.
            block_b = (((B + 1) // 2 + sub - 1) // sub) * sub
        else:
            block_b = B                        # single full-extent block
    return block_b, capacity


def squared_cosine_similarity_loss(anchor, positive, negative, *, reduction="mean"):
    """Squared cosine similarity loss. anchor/positive/negative: (B, D)."""
    B, D = anchor.shape
    assert positive.shape == (B, D) and negative.shape == (B, D)

    itemsize = jnp.dtype(anchor.dtype).itemsize
    block_b, capacity = _pick_block_b(B, D, itemsize)
    num_blocks = pl.cdiv(B, block_b)

    # VMEM limit: enough for 3 x 2 x tile (+ margin), never above ~3/4 of
    # physical per-core VMEM (48 MiB on v7x, 96 MiB on v5e/v6e).
    tile_bytes = block_b * D * itemsize
    vmem_limit = int(min(capacity * 3 // 4,
                         max(3 * 2 * tile_bytes + (16 << 20), 32 << 20)))

    # TODO(synk): for very large D (tens of thousands) add an inner 'arbitrary'
    # grid axis over D-chunks with (block_b, 1) scratch accumulators instead of
    # shrinking block_b.
    per_row = pl.pallas_call(
        _sq_cos_sim_kernel,
        out_shape=jax.ShapeDtypeStruct((B, 1), jnp.float32),
        grid_spec=pltpu.PrefetchScalarGridSpec(
            num_scalar_prefetch=0,
            grid=(num_blocks,),
            in_specs=[
                pl.BlockSpec((block_b, D), lambda i: (i, 0)),
                pl.BlockSpec((block_b, D), lambda i: (i, 0)),
                pl.BlockSpec((block_b, D), lambda i: (i, 0)),
            ],
            # Each grid step owns its own rows of the output -> no accumulator,
            # axis is shardable across both TCs on v7x; ragged last tile is
            # masked by Pallas at writeback (no in-kernel masking needed).
            out_specs=pl.BlockSpec((block_b, 1), lambda i: (i, 0)),
        ),
        compiler_params=pltpu.CompilerParams(
            dimension_semantics=("parallel",),
            vmem_limit_bytes=vmem_limit,
        ),
    )(anchor, positive, negative)

    if reduction == "sum":
        return jnp.sum(per_row)
    if reduction == "mean":
        return jnp.sum(per_row) / jnp.float32(B)
    return per_row[:, 0]  # 'none': per-row loss, shape (B,)


def _reference(anchor, positive, negative, reduction="mean"):
    def cos(x, y):
        w12 = jnp.sum(x * y, axis=-1)
        w1 = jnp.sum(x * x, axis=-1)
        w2 = jnp.sum(y * y, axis=-1)
        return w12 / jnp.sqrt(jnp.maximum(w1 * w2, _EPS * _EPS))

    loss = (1.0 - cos(anchor, positive)) / 2.0 + cos(anchor, negative) ** 2
    if reduction == "sum":
        return loss.sum()
    if reduction == "mean":
        return loss.mean()
    return loss


if __name__ == "__main__":
    key = jax.random.PRNGKey(0)

    def run_case(B, D, dtype, reduction, tol):
        k = jax.random.fold_in(key, B * 1000 + D)
        k_a, k_p, k_n = jax.random.split(k, 3)
        anchor = jax.random.normal(k_a, (B, D), dtype=jnp.float32)
        positive = anchor + 0.1 * jax.random.normal(k_p, (B, D), dtype=jnp.float32)
        negative = jax.random.normal(k_n, (B, D), dtype=jnp.float32)
        a, p, n = (x.astype(dtype) for x in (anchor, positive, negative))

        out = jax.block_until_ready(
            squared_cosine_similarity_loss(a, p, n, reduction=reduction))
        ref = _reference(a.astype(jnp.float32), p.astype(jnp.float32),
                         n.astype(jnp.float32), reduction=reduction)
        assert jnp.allclose(out, ref, rtol=tol, atol=tol), (B, D, dtype, reduction, out, ref)

    run_case(16, 128, jnp.float32, "mean", 1e-5)   # 2 blocks (megacore-friendly)
    run_case(20, 128, jnp.float32, "sum", 1e-5)    # ragged last tile
    run_case(16, 128, jnp.bfloat16, "mean", 3e-2)  # bf16 streaming path

    print("KERNEL_OK")
</pallas_src>

<mosaic_0001>
module attributes {stable_mosaic.version = 11 : i64} {
  func.func @_sq_cos_sim_kernel(%arg0: i32, %arg1: memref<8x128xf32, #tpu.memory_space<vmem>>, %arg2: memref<8x128xf32, #tpu.memory_space<vmem>>, %arg3: memref<8x128xf32, #tpu.memory_space<vmem>>, %arg4: memref<8x1xf32, #tpu.memory_space<vmem>>) attributes {dimension_semantics = [#tpu.dimension_semantics<parallel>], iteration_bounds = array<i64: 2>, scalar_prefetch = 0 : i64, scratch_operands = 0 : i64, tpu.core_type = #tpu.core_type<tc>, window_params = [{transform_indices = @transform_0, window_bounds = array<i64: 8, 128>}, {transform_indices = @transform_1, window_bounds = array<i64: 8, 128>}, {transform_indices = @transform_2, window_bounds = array<i64: 8, 128>}, {transform_indices = @transform_3, window_bounds = array<i64: 8, 1>}]} {
    %c0 = arith.constant 0 : index
    %c0_0 = arith.constant 0 : index
    %0 = vector.load %arg1[%c0, %c0_0] : memref<8x128xf32, #tpu.memory_space<vmem>>, vector<8x128xf32>
    %c0_1 = arith.constant 0 : index
    %c0_2 = arith.constant 0 : index
    %1 = vector.load %arg2[%c0_1, %c0_2] : memref<8x128xf32, #tpu.memory_space<vmem>>, vector<8x128xf32>
    %c0_3 = arith.constant 0 : index
    %c0_4 = arith.constant 0 : index
    %2 = vector.load %arg3[%c0_3, %c0_4] : memref<8x128xf32, #tpu.memory_space<vmem>>, vector<8x128xf32>
    %3 = arith.mulf %0, %1 : vector<8x128xf32>
    %cst = arith.constant dense<0.000000e+00> : vector<8xf32>
    %4 = vector.multi_reduction <add>, %3, %cst [1] : vector<8x128xf32> to vector<8xf32>
    %5 = vector.shape_cast %4 : vector<8xf32> to vector<8x1xf32>
    %6 = arith.mulf %0, %2 : vector<8x128xf32>
    %cst_5 = arith.constant dense<0.000000e+00> : vector<8xf32>
    %7 = vector.multi_reduction <add>, %6, %cst_5 [1] : vector<8x128xf32> to vector<8xf32>
    %8 = vector.shape_cast %7 : vector<8xf32> to vector<8x1xf32>
    %9 = arith.mulf %0, %0 : vector<8x128xf32>
    %cst_6 = arith.constant dense<0.000000e+00> : vector<8xf32>
    %10 = vector.multi_reduction <add>, %9, %cst_6 [1] : vector<8x128xf32> to vector<8xf32>
    %11 = vector.shape_cast %10 : vector<8xf32> to vector<8x1xf32>
    %12 = arith.mulf %1, %1 : vector<8x128xf32>
    %cst_7 = arith.constant dense<0.000000e+00> : vector<8xf32>
    %13 = vector.multi_reduction <add>, %12, %cst_7 [1] : vector<8x128xf32> to vector<8xf32>
    %14 = vector.shape_cast %13 : vector<8xf32> to vector<8x1xf32>
    %15 = arith.mulf %2, %2 : vector<8x128xf32>
    %cst_8 = arith.constant dense<0.000000e+00> : vector<8xf32>
    %16 = vector.multi_reduction <add>, %15, %cst_8 [1] : vector<8x128xf32> to vector<8xf32>
    %17 = vector.shape_cast %16 : vector<8xf32> to vector<8x1xf32>
    %18 = arith.mulf %11, %14 : vector<8x1xf32>
    %cst_9 = arith.constant 1.000000e-16 : f32
    %19 = vector.broadcast %cst_9 : f32 to vector<8x1xf32>
    %20 = arith.maximumf %18, %19 : vector<8x1xf32>
    %21 = math.rsqrt %20 : vector<8x1xf32>
    %22 = arith.mulf %5, %21 : vector<8x1xf32>
    %23 = arith.mulf %11, %17 : vector<8x1xf32>
    %cst_10 = arith.constant 1.000000e-16 : f32
    %24 = vector.broadcast %cst_10 : f32 to vector<8x1xf32>
    %25 = arith.maximumf %23, %24 : vector<8x1xf32>
    %26 = math.rsqrt %25 : vector<8x1xf32>
    %27 = arith.mulf %8, %26 : vector<8x1xf32>
    %cst_11 = arith.constant 1.000000e+00 : f32
    %28 = vector.broadcast %cst_11 : f32 to vector<8x1xf32>
    %29 = arith.subf %28, %22 : vector<8x1xf32>
    %cst_12 = arith.constant 5.000000e-01 : f32
    %30 = vector.broadcast %cst_12 : f32 to vector<8x1xf32>
    %31 = arith.mulf %29, %30 : vector<8x1xf32>
    %32 = arith.mulf %27, %27 : vector<8x1xf32>
    %33 = arith.addf %31, %32 : vector<8x1xf32>
    %c0_13 = arith.constant 0 : index
    %c0_14 = arith.constant 0 : index
    %34 = vector.load %arg4[%c0_13, %c0_14] : memref<8x1xf32, #tpu.memory_space<vmem>>, vector<8x1xf32>
    tpu.vector_store %arg4[%c0_13, %c0_14], %33 {strides = array<i32>} : memref<8x1xf32, #tpu.memory_space<vmem>>, vector<8x1xf32>,
    return
  }
  func.func @transform_0(%arg0: i32) -> (i32, i32) {
    %c0_i32 = arith.constant 0 : i32
    %c0_i32_0 = arith.constant 0 : i32
    return %arg0, %c0_i32 : i32, i32
  }
  func.func @transform_1(%arg0: i32) -> (i32, i32) {
    %c0_i32 = arith.constant 0 : i32
    %c0_i32_0 = arith.constant 0 : i32
    return %arg0, %c0_i32 : i32, i32
  }
  func.func @transform_2(%arg0: i32) -> (i32, i32) {
    %c0_i32 = arith.constant 0 : i32
    %c0_i32_0 = arith.constant 0 : i32
    return %arg0, %c0_i32 : i32, i32
  }
  func.func @transform_3(%arg0: i32) -> (i32, i32) {
    %c0_i32 = arith.constant 0 : i32
    %c0_i32_0 = arith.constant 0 : i32
    return %arg0, %c0_i32 : i32, i32
  }
}

</mosaic_0001>

<llo_original>
// kernel: tpu_custom_call.1
$region0: #{tpu_custom_call.1}
  #allocation0 [shape = 'u32[]', space=smem, size = 0x4, offset = 0x4, fixed_abs, tag = 'smem constant byte address 0x4 - core index']
  #allocation1 [shape = 'u32[144,128]{1,0:T(1,128)}', space=vmem, size = 0x12000, scoped, tag = 'internal scratch']
  %s0 = inlined_call_operand.hbm [shape: f32[16,128], index: 0, kind: input, shape index: {}]
  %s1 = inlined_call_operand.hbm [shape: f32[16,128], index: 1, kind: input, shape index: {}]
  %s2 = inlined_call_operand.hbm [shape: f32[16,128], index: 2, kind: input, shape index: {}]
  %s3 = inlined_call_operand.vmem [shape: f32[16,1], index: 3, kind: output, shape index: {}]
  %s4 = sld [smem:[#allocation0]]
  $region57: #{tpu_custom_call.1} parent=0
    _
  %s6 = ssub.s32 1, %s4
  %s7 = scalar_select 0, %s6, %s4
  $region1: #{tpu_custom_call.1} parent=0
    #allocation2 [shape = 'u8[8192]{0}', space=vmem, size = 0x2000, scoped, tag = 'input window, operand 0']
    #allocation3 [shape = 's32[2]{0}', space=sflag, size = 0x8, scoped, tag = 'scoped memory for tpu_custom_call.1']
    #allocation4 [shape = 'u8[8192]{0}', space=vmem, size = 0x2000, scoped, tag = 'input window, operand 1']
    #allocation5 [shape = 's32[2]{0}', space=sflag, size = 0x8, scoped, tag = 'scoped memory for tpu_custom_call.1']
    #allocation6 [shape = 'u8[8192]{0}', space=vmem, size = 0x2000, scoped, tag = 'input window, operand 2']
    %8 = vsyncpa [#allocation3], 0
    %s9 = scalar_lea.sflag [#allocation3], 1
    %10 = vsyncpa %s9, 0
    %11 = vsyncpa [#allocation5], 0
    %s12 = scalar_lea.sflag [#allocation5], 1
    %13 = vsyncpa %s12, 0
    loop: start=0, step=1, limit=4
    $region2: #{tpu_custom_call.1} parent=1 // loop_pre_header
      _
    $region3: #{tpu_custom_call.1} parent=1 // loop_header
      %s15 = sphi 0, %s19
      %p16 = scmp.ge.s32.totalorder %s15, 4
      %s25 = sphi 0, %s27
      %s28 = sphi 0, %s25
      %s29 = sphi 0, %s28
      %s45 = sphi 0, %s29
      %s51 = sphi 0, %s53
      %s54 = sphi 0, %s51
      %s55 = sphi 0, %s54
      %s71 = sphi 0, %s55
      %s77 = sphi 0, %s79
      %s80 = sphi 0, %s77
      %s81 = sphi 0, %s80
      %s97 = sphi 0, %s81
      %s103 = sphi 0, %s105
      %s106 = sphi 0, %s103
      %s107 = sphi 0, %s106
      %s123 = sphi 0, %s107
    $region4: #{tpu_custom_call.1} parent=1 // loop_header_branch
      %18 = sbr.rel (%p16) target = $region8
    $region5: #{tpu_custom_call.1} parent=1 // loop_body
      %s20 = ssub.s32 %s15, 1
      %s21 = ssub.s32 %s15, 2
      %s22 = sadd.s32 %s15, 1
      %s23 = ssub.s32 %s15, %s22
      %p24 = scmp.eq.s32.totalorder %s23, 0
      %s26 = sadd.s32 %s25, 1
      %s27 = scalar_select %p24, %s25, %s26
      %p30 = pneg %p24
      %p31 = scmp.eq.s32.totalorder %s15, 1
      %p32 = por %p30, %p31
      %p33 = scmp.ne.s32.totalorder %s25, %s28
      %p34 = scmp.eq.s32.totalorder %s15, 0
      %p35 = por %p33, %p34
      %p36 = scmp.ne.s32.totalorder %s25, %s28
      %p37 = scmp.eq.s32.totalorder %s20, 1
      %p38 = por %p36, %p37
      %p39 = scmp.ne.s32.totalorder %s28, %s29
      %p40 = scmp.eq.s32.totalorder %s20, 0
      %p41 = por %p39, %p40
      %p42 = scmp.ne.s32.totalorder %s28, %s29
      %p43 = scmp.eq.s32.totalorder %s21, 1
      %p44 = por %p42, %p43
      %p46 = scmp.ne.s32.totalorder %s29, %s45
      %p47 = scmp.eq.s32.totalorder %s21, 0
      %p48 = por %p46, %p47
      %s49 = ssub.s32 %s15, %s22
      %p50 = scmp.eq.s32.totalorder %s49, 0
      %s52 = sadd.s32 %s51, 1
      %s53 = scalar_select %p50, %s51, %s52
      %p56 = pneg %p50
      %p57 = scmp.eq.s32.totalorder %s15, 1
      %p58 = por %p56, %p57
      %p59 = scmp.ne.s32.totalorder %s51, %s54
      %p60 = scmp.eq.s32.totalorder %s15, 0
      %p61 = por %p59, %p60
      %p62 = scmp.ne.s32.totalorder %s51, %s54
      %p63 = scmp.eq.s32.totalorder %s20, 1
      %p64 = por %p62, %p63
      %p65 = scmp.ne.s32.totalorder %s54, %s55
      %p66 = scmp.eq.s32.totalorder %s20, 0
      %p67 = por %p65, %p66
      %p68 = scmp.ne.s32.totalorder %s54, %s55
      %p69 = scmp.eq.s32.totalorder %s21, 1
      %p70 = por %p68, %p69
      %p72 = scmp.ne.s32.totalorder %s55, %s71
      %p73 = scmp.eq.s32.totalorder %s21, 0
      %p74 = por %p72, %p73
      %s75 = ssub.s32 %s15, %s22
      %p76 = scmp.eq.s32.totalorder %s75, 0
      %s78 = sadd.s32 %s77, 1
      %s79 = scalar_select %p76, %s77, %s78
      %p82 = pneg %p76
      %p83 = scmp.eq.s32.totalorder %s15, 1
      %p84 = por %p82, %p83
      %p85 = scmp.ne.s32.totalorder %s77, %s80
      %p86 = scmp.eq.s32.totalorder %s15, 0
      %p87 = por %p85, %p86
      %p88 = scmp.ne.s32.totalorder %s77, %s80
      %p89 = scmp.eq.s32.totalorder %s20, 1
      %p90 = por %p88, %p89
      %p91 = scmp.ne.s32.totalorder %s80, %s81
      %p92 = scmp.eq.s32.totalorder %s20, 0
      %p93 = por %p91, %p92
      %p94 = scmp.ne.s32.totalorder %s80, %s81
      %p95 = scmp.eq.s32.totalorder %s21, 1
      %p96 = por %p94, %p95
      %p98 = scmp.ne.s32.totalorder %s81, %s97
      %p99 = scmp.eq.s32.totalorder %s21, 0
      %p100 = por %p98, %p99
      %s101 = ssub.s32 %s15, %s22
      %p102 = scmp.eq.s32.totalorder %s101, 0
      %s104 = sadd.s32 %s103, 1
      %s105 = scalar_select %p102, %s103, %s104
      %p108 = pneg %p102
      %p109 = scmp.eq.s32.totalorder %s15, 1
      %p110 = por %p108, %p109
      %p111 = scmp.ne.s32.totalorder %s103, %s106
      %p112 = scmp.eq.s32.totalorder %s15, 0
      %p113 = por %p111, %p112
      %p114 = scmp.ne.s32.totalorder %s103, %s106
      %p115 = scmp.eq.s32.totalorder %s20, 1
      %p116 = por %p114, %p115
      %p117 = scmp.ne.s32.totalorder %s106, %s107
      %p118 = scmp.eq.s32.totalorder %s20, 0
      %p119 = por %p117, %p118
      %p120 = scmp.ne.s32.totalorder %s106, %s107
      %p121 = scmp.eq.s32.totalorder %s21, 1
      %p122 = por %p120, %p121
      %p124 = scmp.ne.s32.totalorder %s107, %s123
      %p125 = scmp.eq.s32.totalorder %s21, 0
      %p126 = por %p124, %p125
      %p127 = scmp.le.s32.totalorder 1, %s15
      %p128 = scmp.lt.s32.totalorder %s15, 3
      %p129 = pnand %p127, %p128
      %p130 = pneg %p129
      // Predicated region
      $region9: #{tpu_custom_call.1} parent=5 // pred_check
        _
      $region10: #{tpu_custom_call.1} parent=5 // pred_check_branch
        %132 = sbr.rel (%p129) target = $region12
      $region11: #{tpu_custom_call.1} parent=5 // pred_region
        %s133 = ssub.s32 %s15, 1
      $region12: #{tpu_custom_call.1} parent=5 // pred_fallthru
        _
      %p134 = scmp.lt.s32.totalorder %s15, 2
      // Predicated region
      $region13: #{tpu_custom_call.1} parent=5 // pred_check
        %p135 = pneg %p134
      $region14: #{tpu_custom_call.1} parent=5 // pred_check_branch
        %137 = sbr.rel (%p135) target = $region16
      $region15: #{tpu_custom_call.1} parent=5 // pred_region
        // Predicated region
        $region17: #{tpu_custom_call.1} parent=15 // pred_check
          %p138 = pneg %p35
        $region18: #{tpu_custom_call.1} parent=15 // pred_check_branch
          %140 = sbr.rel (%p138) target = $region20
        $region19: #{tpu_custom_call.1} parent=15 // pred_region
          %s141 = sand.u32 %s25, 1
          %s142 = scalar_lea.sflag [#allocation3], %s141
          %s143 = sand.u32 %s25, 1
          %s144 = smul.addr %s143, 8
          %s145 = scalar_lea.vmem [#allocation2], %s144
          %s147 = ssub.s32 128, 128
          %148 = vsyncadd %s142, %s147
          %s149 = smul.addr %s15, 128
          %s150 = scalar_lea.hbm %s0, %s149
          %s152 = sshll.u32 %s145, 4
          %s153 = int_to_ptr.vmem [resolvable:$true] %s152
          %155 = dma.hbm_to_vmem [thread:$0]  %s150, 128, %s153, %s142
        $region20: #{tpu_custom_call.1} parent=15 // pred_fallthru
          _
        // Predicated region
        $region21: #{tpu_custom_call.1} parent=15 // pred_check
          %p156 = pneg %p61
        $region22: #{tpu_custom_call.1} parent=15 // pred_check_branch
          %158 = sbr.rel (%p156) target = $region24
        $region23: #{tpu_custom_call.1} parent=15 // pred_region
          %s159 = sand.u32 %s15, 1
          %s160 = scalar_lea.sflag [#allocation5], %s159
          %s161 = sand.u32 %s51, 1
          %s162 = smul.addr %s161, 8
          %s163 = scalar_lea.vmem [#allocation4], %s162
          %s165 = ssub.s32 128, 128
          %166 = vsyncadd %s160, %s165
          %s167 = smul.addr %s15, 128
          %s168 = scalar_lea.hbm %s1, %s167
          %s170 = sshll.u32 %s163, 4
          %s171 = int_to_ptr.vmem [resolvable:$true] %s170
          %173 = dma.hbm_to_vmem [thread:$0]  %s168, 128, %s171, %s160
        $region24: #{tpu_custom_call.1} parent=15 // pred_fallthru
          _
        // Predicated region
        $region25: #{tpu_custom_call.1} parent=15 // pred_check
          %p174 = pneg %p87
        $region26: #{tpu_custom_call.1} parent=15 // pred_check_branch
          %176 = sbr.rel (%p174) target = $region28
        $region27: #{tpu_custom_call.1} parent=15 // pred_region
          %s177 = sand.u32 %s15, 1
          %s178 = scalar_lea.sflag [#allocation5], %s177
          %s179 = sand.u32 %s77, 1
          %s180 = smul.addr %s179, 8
          %s181 = scalar_lea.vmem [#allocation6], %s180
          %s183 = ssub.s32 128, 128
          %184 = vsyncadd %s178, %s183
          %s185 = smul.addr %s15, 128
          %s186 = scalar_lea.hbm %s2, %s185
          %s188 = sshll.u32 %s181, 4
          %s189 = int_to_ptr.vmem [resolvable:$true] %s188
          %191 = dma.hbm_to_vmem [thread:$0]  %s186, 128, %s189, %s178
        $region28: #{tpu_custom_call.1} parent=15 // pred_fallthru
          _
      $region16: #{tpu_custom_call.1} parent=5 // pred_fallthru
        _
      %p192 = scmp.le.s32.totalorder 1, %s15
      %p193 = scmp.lt.s32.totalorder %s15, 3
      %p194 = pnand %p192, %p193
      %p195 = pneg %p194
      // Predicated region
      $region29: #{tpu_custom_call.1} parent=5 // pred_check
        _
      $region30: #{tpu_custom_call.1} parent=5 // pred_check_branch
        %197 = sbr.rel (%p194) target = $region32
      $region31: #{tpu_custom_call.1} parent=5 // pred_region
        %s198 = ssub.s32 %s15, 1
        %s199 = sand.u32 %s28, 1
        %s200 = scalar_lea.sflag [#allocation3], %s199
        %s201 = sand.u32 %s28, 1
        %s202 = smul.addr %s201, 8
        %s203 = scalar_lea.vmem [#allocation2], %s202
        // Predicated region
        $region33: #{tpu_custom_call.1} parent=31 // pred_check
          %p204 = pneg %p41
        $region34: #{tpu_custom_call.1} parent=31 // pred_check_branch
          %206 = sbr.rel (%p204) target = $region36
        $region35: #{tpu_custom_call.1} parent=31 // pred_region
          %207 = dma.done %s200, 128
        $region36: #{tpu_custom_call.1} parent=31 // pred_fallthru
          _
        %s208 = sand.u32 %s20, 1
        %s209 = scalar_lea.sflag [#allocation5], %s208
        %s210 = sand.u32 %s54, 1
        %s211 = smul.addr %s210, 8
        %s212 = scalar_lea.vmem [#allocation4], %s211
        // Predicated region
        $region37: #{tpu_custom_call.1} parent=31 // pred_check
          %p213 = pneg %p67
        $region38: #{tpu_custom_call.1} parent=31 // pred_check_branch
          %215 = sbr.rel (%p213) target = $region40
        $region39: #{tpu_custom_call.1} parent=31 // pred_region
          %216 = dma.done %s209, 128
        $region40: #{tpu_custom_call.1} parent=31 // pred_fallthru
          _
        %s217 = sand.u32 %s20, 1
        %s218 = scalar_lea.sflag [#allocation5], %s217
        %s219 = sand.u32 %s80, 1
        %s220 = smul.addr %s219, 8
        %s221 = scalar_lea.vmem [#allocation6], %s220
        // Predicated region
        $region41: #{tpu_custom_call.1} parent=31 // pred_check
          %p222 = pneg %p93
        $region42: #{tpu_custom_call.1} parent=31 // pred_check_branch
          %224 = sbr.rel (%p222) target = $region44
        $region43: #{tpu_custom_call.1} parent=31 // pred_region
          %225 = dma.done %s218, 128
        $region44: #{tpu_custom_call.1} parent=31 // pred_fallthru
          _
        %s226 = sand.u32 %s28, 1
        %s227 = scalar_lea.sflag [#allocation3], %s226
        %s228 = sand.u32 %s28, 1
        %s229 = smul.addr %s228, 8
        %s230 = scalar_lea.vmem [#allocation2], %s229
        %p231 = pneg %p41
        %p232 = pneg %p38
        %s233 = sand.u32 %s20, 1
        %s234 = scalar_lea.sflag [#allocation5], %s233
        %s235 = sand.u32 %s54, 1
        %s236 = smul.addr %s235, 8
        %s237 = scalar_lea.vmem [#allocation4], %s236
        %p238 = pneg %p67
        %p239 = pneg %p64
        %s240 = sand.u32 %s20, 1
        %s241 = scalar_lea.sflag [#allocation5], %s240
        %s242 = sand.u32 %s80, 1
        %s243 = smul.addr %s242, 8
        %s244 = scalar_lea.vmem [#allocation6], %s243
        %p245 = pneg %p93
        %p246 = pneg %p90
        %p247 = pneg %p119
        %p248 = pneg %p116
        %p249 = scmp.lt.s32.totalorder %s20, 1
        %s250 = scalar_select %p249, %s20, 1
        %s251 = smul.addr %s250, 8
        %s252 = scalar_lea.vmem %s3, %s251
        %p253 = scmp.lt.s32.totalorder %s20, 1
        %s254 = scalar_select %p253, %s20, 1
        %s255 = smul.addr %s254, 8
        %s256 = scalar_lea.vmem %s3, %s255
        %v257 = vld [vmem:[%s203] sm:$0xff]
        %v258 = vld [vmem:[%s212] sm:$0xff]
        %v259 = vld [vmem:[%s221] sm:$0xff]
        %v260 = vmul.f32 %v257, %v258
        %261 = vadd.xlane.f32.xlu0 %v260
        %v262 = vpop.xlane.xlu0 %261
        %v263 = vmul.f32 %v257, %v259
        %264 = vadd.xlane.f32.xlu0 %v263
        %v265 = vpop.xlane.xlu0 %264
        %v266 = vmul.f32 %v257, %v257
        %267 = vadd.xlane.f32.xlu0 %v266
        %v268 = vpop.xlane.xlu0 %267
        %v269 = vmul.f32 %v258, %v258
        %270 = vadd.xlane.f32.xlu0 %v269
        %v271 = vpop.xlane.xlu0 %270
        %v272 = vmul.f32 %v259, %v259
        %273 = vadd.xlane.f32.xlu0 %v272
        %v274 = vpop.xlane.xlu0 %273
        %v275 = vmul.f32 %v268, %v271
        %v276 = vmax.f32 %v275, 1e-16
        %v277 = vrsqrt.pop %v276
        %v278 = vmul.f32 %v262, %v277
        %v279 = vmul.f32 %v268, %v274
        %v280 = vmax.f32 %v279, 1e-16
        %v281 = vrsqrt.pop %v280
        %v282 = vmul.f32 %v265, %v281
        %v283 = vsub.f32 1.0, %v278
        %v284 = vmul.f32 %v283, 0.5
        %v285 = vmul.f32 %v282, %v282
        %v286 = vadd.f32 %v284, %v285
        %vm287 = vcmask 7168
        %288 = vst.msk [vmem:[%s256] sm:$0xff] %vm287, %v286
        %p289 = scmp.lt.s32.totalorder %s20, 1
        %s290 = scalar_select %p289, %s20, 1
        %s291 = smul.addr %s290, 8
        %s292 = scalar_lea.vmem %s3, %s291
        // Predicated region
        $region45: #{tpu_custom_call.1} parent=31 // pred_check
          %p293 = pneg %p116
        $region46: #{tpu_custom_call.1} parent=31 // pred_check_branch
          %295 = sbr.rel (%p293) target = $region48
        $region47: #{tpu_custom_call.1} parent=31 // pred_region
          _
        $region48: #{tpu_custom_call.1} parent=31 // pred_fallthru
          _
      $region32: #{tpu_custom_call.1} parent=5 // pred_fallthru
        _
      %p296 = scmp.le.s32.totalorder 2, %s15
      // Predicated region
      $region49: #{tpu_custom_call.1} parent=5 // pred_check
        %p297 = pneg %p296
      $region50: #{tpu_custom_call.1} parent=5 // pred_check_branch
        %299 = sbr.rel (%p297) target = $region52
      $region51: #{tpu_custom_call.1} parent=5 // pred_region
        %s300 = ssub.s32 %s15, 2
        // Predicated region
        $region53: #{tpu_custom_call.1} parent=51 // pred_check
          %p301 = pneg %p122
        $region54: #{tpu_custom_call.1} parent=51 // pred_check_branch
          %303 = sbr.rel (%p301) target = $region56
        $region55: #{tpu_custom_call.1} parent=51 // pred_region
          %p304 = scmp.lt.s32.totalorder %s21, 1
          %s305 = scalar_select %p304, %s21, 1
          %s306 = smul.addr %s305, 8
          %s307 = scalar_lea.vmem %s3, %s306
        $region56: #{tpu_custom_call.1} parent=51 // pred_fallthru
          _
      $region52: #{tpu_custom_call.1} parent=5 // pred_fallthru
        _
    $region6: #{tpu_custom_call.1} parent=1 // loop_footer
      %s19 = sadd.s32 1, %s15
    $region7: #{tpu_custom_call.1} parent=1 // loop_footer_branch
      %14 = sbr.rel target = $region3
    $region8: #{tpu_custom_call.1} parent=1 // loop_exit
      _
    %308 = vsyncpa [#allocation3], 1
    %s309 = scalar_lea.sflag [#allocation3], 1
    %310 = vsyncpa %s309, 1
    %311 = vsyncpa [#allocation5], 1
    %s312 = scalar_lea.sflag [#allocation5], 1
    %313 = vsyncpa %s312, 1

</llo_original>
